<compile_context>
chip_gen: v7x
topology: tpu7x:2x2x1
jax: 0.10.0
libtpu: 0.0.40
codegen_flags: <defaults>
</compile_context>

<pallas_src>
import re

import jax
import jax.numpy as jnp
from jax import lax
from jax.experimental import pallas as pl
from jax.experimental.pallas import tpu as pltpu

LRELU_SLOPE = 0.1                     # modules.LRELU_SLOPE
COMPUTE_DTYPE = jnp.bfloat16          # inter-layer activations / MXU operands


# ----------------------------------------------------------------------------
# Small helpers / per-generation tuning
# ----------------------------------------------------------------------------
def _pow2_at_least(n, floor=8):
    p = floor
    while p < n:
        p *= 2
    return p


def _tpu_generation():
    try:
        kind = jax.devices()[0].device_kind.lower()
    except Exception:
        return 0
    m = re.search(r"(\d+)", kind)
    return int(m.group(1)) if m else 0


def _vmem_limit_bytes(gen):
    if gen >= 7:
        return 40 * 1024 * 1024          # v7x: 64 MiB physical, stay well below
    if gen in (5, 6):
        return 64 * 1024 * 1024          # v5e/v6e: 128 MiB physical
    return 32 * 1024 * 1024


def _elemwise_dtype(gen):
    # v6e/v7x have a bf16 VPU path; keep f32 elementwise on v5e / unknown.
    return jnp.bfloat16 if gen >= 6 else jnp.float32


def _tile_rows_from_budget(cin, gen):
    """Time-tile rows targeting a roughly constant input-block byte budget."""
    budget = 512 * 1024 if gen >= 6 else 256 * 1024
    rows = max(8, min(budget // max(2 * cin, 1), 4096))
    p = 8
    while p * 2 <= rows:
        p *= 2
    return p


def _leaky_relu(x, slope):
    return jnp.where(x > 0, x, x * slope)


def _conv_matmul(xa, w_ref, dilation, rows, start, concat_ok, mxu_dtype):
    """sum_k xa[start + k*d : start + k*d + rows] @ w[k]  (f32 accumulation)."""
    k, c, _ = w_ref.shape

    def sl(i):
        s = start + i * dilation
        return xa[s:s + rows, :].astype(mxu_dtype)

    if concat_ok and k > 1:
        taps = jnp.concatenate([sl(i) for i in range(k)], axis=1)
        return jnp.dot(taps, w_ref[...].reshape(k * c, -1),
                       preferred_element_type=jnp.float32)
    acc = jnp.dot(sl(0), w_ref[0], preferred_element_type=jnp.float32)
    for i in range(1, k):
        acc = acc + jnp.dot(sl(i), w_ref[i], preferred_element_type=jnp.float32)
    return acc


# ----------------------------------------------------------------------------
# Core Pallas kernel: time-tiled fused 1-D convolution (optionally a fused pair
# of convs = one ResBlock1 stage) with in-kernel halo masking and residuals.
# ----------------------------------------------------------------------------
def conv_block(x, w1, b1, d1, *, pad_left, t_out, t_valid_in, gen,
               slope1=None, conv2=None, residuals=(), add_input_residual=False,
               post_scale=None, out_dtype=None):
    """Per (batch, time-tile) grid cell computes
           y = conv1(leaky_relu_{slope1}(x)) + b1
           y = conv2(leaky_relu_{slope2}(y)) + b2        (optional, in VMEM)
           y = (y + input_residual + sum(residuals)) * post_scale

    x: (B, T_phys, Cin) channels-last; rows >= t_valid_in are garbage and are
    masked to zero in-kernel (this replaces wrapper-level zero padding).
    Returns a (B, n_t*t_tile, Cout) array whose rows >= t_out are garbage."""
    B, T_phys, Cin = x.shape
    K1, _, C1 = w1.shape
    halo1 = d1 * (K1 - 1)
    has2 = conv2 is not None
    if has2:
        w2, b2, d2, slope2, pad2 = conv2
        K2, _, C2 = w2.shape
        halo2 = d2 * (K2 - 1)
        Cout = C2
    else:
        halo2 = 0
        Cout = C1
    halo = halo1 + halo2
    out_dtype = out_dtype or x.dtype
    if add_input_residual:
        assert Cout == Cin
    assert 0 <= pad_left <= max(halo, 1)

    elem_dtype = _elemwise_dtype(gen)
    mxu_dtype = x.dtype

    hb = _pow2_at_least(max(halo, 1), floor=8)
    # Channel-scaled time tile (constant byte budget), clamped to what's needed.
    t_tile = min(_tile_rows_from_budget(Cin, gen), _pow2_at_least(t_out, floor=8))
    t_tile = max(t_tile, hb)
    # Prefer a tile that divides the stored length (avoids any wrapper pad).
    while t_tile > hb and T_phys % t_tile != 0:
        t_tile //= 2
    # v7x: keep both TensorCores busy (>= a few parallel grid blocks).
    if gen >= 7:
        while t_tile > max(hb, 16) and B * pl.cdiv(t_out, t_tile) < 4:
            t_tile //= 2

    n_t = pl.cdiv(t_out, t_tile)
    need = n_t * t_tile
    if T_phys % t_tile != 0 or T_phys < need:      # rare fallback (odd lengths)
        new_len = max(need, pl.cdiv(T_phys, t_tile) * t_tile)
        x = jnp.pad(x, ((0, 0), (0, new_len - T_phys), (0, 0)))
        T_phys = new_len

    ratio = t_tile // hb
    nblk = T_phys // hb
    l1 = t_tile + halo2                    # conv1 rows needed per tile
    off1 = hb - pad_left                   # conv1 tap start inside the window
    W = t_tile + 2 * hb
    concat1_ok = (Cin % 128 == 0) and (gen < 7 or Cin < 256)
    concat2_ok = has2 and (C1 % 128 == 0) and (gen < 7 or C1 < 256)

    args = [x, x, x, w1.astype(mxu_dtype), b1.astype(jnp.float32)]
    in_specs = [
        pl.BlockSpec((1, t_tile, Cin), lambda b, t: (b, t, 0)),
        pl.BlockSpec((1, hb, Cin),
                     lambda b, t: (b, jnp.maximum(t * ratio - 1, 0), 0)),
        pl.BlockSpec((1, hb, Cin),
                     lambda b, t: (b, jnp.minimum((t + 1) * ratio, nblk - 1), 0)),
        pl.BlockSpec((K1, Cin, C1), lambda b, t: (0, 0, 0)),
        pl.BlockSpec((1, C1), lambda b, t: (0, 0)),
    ]
    if has2:
        args += [w2.astype(mxu_dtype), b2.astype(jnp.float32)]
        in_specs += [pl.BlockSpec((K2, C1, C2), lambda b, t: (0, 0, 0)),
                     pl.BlockSpec((1, C2), lambda b, t: (0, 0))]
    res_args = []
    for r in residuals:
        Tr = r.shape[1]
        if Tr < need or Tr % t_tile != 0:
            tgt = max(need, pl.cdiv(Tr, t_tile) * t_tile)
            r = jnp.pad(r, ((0, 0), (0, tgt - Tr), (0, 0)))
        res_args.append(r)
        in_specs.append(pl.BlockSpec((1, t_tile, Cout), lambda b, t: (b, t, 0)))
    args += res_args
    n_res = len(res_args)

    def kernel(*refs):
        it = iter(refs)
        xc_ref = next(it)
        xl_ref = next(it)
        xr_ref = next(it)
        w1_ref = next(it)
        b1_ref = next(it)
        if has2:
            w2_ref = next(it)
            b2_ref = next(it)
        res_refs = [next(it) for _ in range(n_res)]
        o_ref = next(it)

        t = pl.program_id(1)
        # Window = [left halo | current tile | right halo]; rows whose global
        # position is outside [0, t_valid_in) are zeroed (handles conv padding,
        # clamped halo blocks and garbage rows beyond the valid length).
        xw = jnp.concatenate(
            [xl_ref[0], xc_ref[0], xr_ref[0]], axis=0).astype(elem_dtype)
        row = lax.broadcasted_iota(jnp.int32, (W, 1), 0)
        pos = t * t_tile - hb + row
        xw = jnp.where((pos >= 0) & (pos < t_valid_in), xw, 0.0)

        if add_input_residual:
            res_in = xw[hb:hb + t_tile, :]        # pre-activation residual rows

        if slope1 is not None:
            xw = _leaky_relu(xw, slope1)          # lrelu(0) == 0: mask-safe
        acc = _conv_matmul(xw, w1_ref, d1, l1, off1, concat1_ok, mxu_dtype)
        acc = acc + b1_ref[...]

        if has2:
            a = _leaky_relu(acc, slope2)
            # conv2 zero-pads the *activated* conv1 output: rows whose global
            # conv1-output position is outside [0, t_valid_in) must be zero.
            irow = lax.broadcasted_iota(jnp.int32, (l1, 1), 0)
            mpos = t * t_tile - pad2 + irow
            a = jnp.where((mpos >= 0) & (mpos < t_valid_in), a, 0.0)
            acc = _conv_matmul(a, w2_ref, d2, t_tile, 0, concat2_ok, mxu_dtype)
            acc = acc + b2_ref[...]

        if add_input_residual:
            acc = acc + res_in.astype(jnp.float32)
        for r_ref in res_refs:
            acc = acc + r_ref[0].astype(jnp.float32)
        if post_scale is not None:
            acc = acc * post_scale
        o_ref[0] = acc.astype(o_ref.dtype)

    return pl.pallas_call(
        kernel,
        grid=(B, n_t),
        in_specs=in_specs,
        out_specs=pl.BlockSpec((1, t_tile, Cout), lambda b, t: (b, t, 0)),
        out_shape=jax.ShapeDtypeStruct((B, need, Cout), out_dtype),
        compiler_params=pltpu.CompilerParams(
            dimension_semantics=("parallel", "parallel"),
            vmem_limit_bytes=_vmem_limit_bytes(gen)),
    )(*args)


# ----------------------------------------------------------------------------
# ConvTranspose1d via polyphase decomposition (no zero insertion).
# ----------------------------------------------------------------------------
def conv_transpose1d_op(x, w, b, *, stride, padding, pre_slope, t_valid_in, gen):
    """x: (B, T_phys, Cin) with t_valid_in valid rows; w: (Cin, Cout, K) (torch
    ConvTranspose1d layout); b: (1, Cout).
    Returns (y, t_valid_out) where y is (B, >= t_valid_out, Cout)."""
    B, _, Cin = x.shape
    _, Cout, K = w.shape
    s, p = stride, padding
    t_out = (t_valid_in - 1) * s + K - 2 * p
    km = -(-K // s)
    w_pad = jnp.pad(w, ((0, 0), (0, 0), (0, s * km - K)))
    offs = [(r + p) // s for r in range(s)]
    off_max, off_min = max(offs), min(offs)
    kh = km + (off_max - off_min)
    phases = []
    for r in range(s):
        c_r = (r + p) % s
        g_r = w_pad[:, :, c_r::s]                          # (Cin, Cout, km)
        d_r = off_max - offs[r]
        h_r = jnp.pad(g_r, ((0, 0), (0, 0), (d_r, kh - km - d_r)))
        phases.append(h_r[:, :, ::-1])                     # cross-corr form
    hs = jnp.stack(phases, axis=0)                         # (s, Cin, Cout, kh)
    w_eff = jnp.transpose(hs, (3, 1, 0, 2)).reshape(kh, Cin, s * Cout)
    b_eff = jnp.tile(b, (1, s))                            # (1, s*Cout)

    tq = -(-t_out // s)                                    # outputs per phase
    pad_left = kh - 1 - off_max
    assert pad_left >= 0
    # F.leaky_relu(x, LRELU_SLOPE) preceding the upsampler is fused via slope1.
    y = conv_block(x, w_eff, b_eff, 1, pad_left=pad_left, t_out=tq,
                   t_valid_in=t_valid_in, gen=gen, slope1=pre_slope)
    tq_phys = y.shape[1]
    y = y.reshape(B, tq_phys * s, Cout)                    # interleave phases
    return y, t_out


# ----------------------------------------------------------------------------
# conv_post: (Cout=1, K=7, pad=3, no bias) + leaky_relu(0.01) + tanh,
# computed in (B, Cin, T) layout so the output is lane-dense NCW.
# ----------------------------------------------------------------------------
def conv_post_op(x, w, t_valid, gen, slope=0.01):
    B, T_phys, Cin = x.shape
    K = w.shape[0]
    pad = (K - 1) // 2
    hl = 128
    lt = min(2048, _pow2_at_least(t_valid, floor=hl))

    # TODO(synk): have the last resblock write (B, C, T) directly so this
    # transpose (one extra HBM pass of the largest tensor) disappears.
    xT = jnp.transpose(x, (0, 2, 1))                       # (B, Cin, T_phys)
    Tp = T_phys
    while lt > hl and Tp % lt != 0:
        lt //= 2
    n_t = pl.cdiv(t_valid, lt)
    need = n_t * lt
    if Tp % lt != 0 or Tp < need:
        new_len = max(need, pl.cdiv(Tp, lt) * lt)
        xT = jnp.pad(xT, ((0, 0), (0, 0), (0, new_len - Tp)))
        Tp = new_len
    ratio = lt // hl
    nblk = Tp // hl
    wT = jnp.transpose(w[:, :, 0], (1, 0)).astype(jnp.float32)   # (Cin, K)
    W = lt + 2 * hl
    off = hl - pad

    def kernel(xc_ref, xl_ref, xr_ref, w_ref, o_ref):
        t = pl.program_id(1)
        xw = jnp.concatenate(
            [xl_ref[0], xc_ref[0], xr_ref[0]], axis=-1).astype(jnp.float32)
        col = lax.broadcasted_iota(jnp.int32, (1, W), 1)
        pos = t * lt - hl + col
        xw = jnp.where((pos >= 0) & (pos < t_valid), xw, 0.0)
        xw = _leaky_relu(xw, slope)
        wv = w_ref[...]
        acc = xw[:, off:off + lt] * wv[:, 0:1]             # VPU multiply
        for k in range(1, K):
            acc = acc + xw[:, off + k:off + k + lt] * wv[:, k:k + 1]
        y = jnp.sum(acc, axis=0, keepdims=True)            # (1, lt) lane-dense
        o_ref[0] = jnp.tanh(y).astype(o_ref.dtype)

    out = pl.pallas_call(
        kernel,
        grid=(B, n_t),
        in_specs=[
            pl.BlockSpec((1, Cin, lt), lambda b, t: (b, 0, t)),
            pl.BlockSpec((1, Cin, hl),
                         lambda b, t: (b, 0, jnp.maximum(t * ratio - 1, 0))),
            pl.BlockSpec((1, Cin, hl),
                         lambda b, t: (b, 0, jnp.minimum((t + 1) * ratio, nblk - 1))),
            pl.BlockSpec((Cin, K), lambda b, t: (0, 0)),
        ],
        out_specs=pl.BlockSpec((1, 1, lt), lambda b, t: (b, 0, t)),
        out_shape=jax.ShapeDtypeStruct((B, 1, need), jnp.float32),
        compiler_params=pltpu.CompilerParams(
            dimension_semantics=("parallel", "parallel"),
            vmem_limit_bytes=_vmem_limit_bytes(gen)),
    )(xT, xT, xT, wT)
    return out[:, :, :t_valid]


# ----------------------------------------------------------------------------
# ResBlock1 and Generator forward (composition of fused Pallas conv kernels)
# ----------------------------------------------------------------------------
def resblock1_forward(x, rb, t_valid, gen, xs_prev=None, final_scale=None):
    """ResBlock1 with every (conv1 -> lrelu -> conv2 + residual) pair fused into
    one pallas_call.  The residual comes straight from the loaded input window
    (no extra HBM read); the cross-resblock sum `xs_prev` and the final
    /num_kernels are folded into the last pair."""
    n = len(rb['convs1'])
    cur = x
    for idx, (c1, c2) in enumerate(zip(rb['convs1'], rb['convs2'])):
        last = idx == n - 1
        extra = (xs_prev,) if (last and xs_prev is not None) else ()
        cur = conv_block(
            cur, c1['w'], c1['b'], c1['dilation'],
            pad_left=c1['pad'] + c2['pad'],
            t_out=t_valid, t_valid_in=t_valid, gen=gen,
            slope1=LRELU_SLOPE,
            conv2=(c2['w'], c2['b'], c2['dilation'], LRELU_SLOPE, c2['pad']),
            add_input_residual=True,
            residuals=extra,
            post_scale=(final_scale if last else None))
    return cur


def generator_forward(x, params):
    """x: (B, T, C_initial) channels-last.  Returns (B, 1, T_out) (NCW, like the
    torch module).  Only ResBlock1 ('1') is implemented."""
    # TODO(synk): cond path (g is not None) omitted since gin_channels == 0.
    gen = _tpu_generation()
    x = x.astype(COMPUTE_DTYPE)
    t_valid = x.shape[1]
    num_ups = len(params['ups'])
    num_kernels = len(params['resblocks']) // num_ups

    cp = params['conv_pre']
    x = conv_block(x, cp['w'], cp['b'], 1,
                   pad_left=(cp['w'].shape[0] - 1) // 2,
                   t_out=t_valid, t_valid_in=t_valid, gen=gen)
    for i in range(num_ups):
        up = params['ups'][i]
        x, t_valid = conv_transpose1d_op(
            x, up['w'], up['b'], stride=up['stride'], padding=up['padding'],
            pre_slope=LRELU_SLOPE, t_valid_in=t_valid, gen=gen)
        xs = None
        for j in range(num_kernels):
            rb = params['resblocks'][i * num_kernels + j]
            xs = resblock1_forward(
                x, rb, t_valid, gen, xs_prev=xs,
                final_scale=(1.0 / num_kernels) if j == num_kernels - 1 else None)
        x = xs
    # final F.leaky_relu (default slope 0.01) + conv_post + tanh, NCW output.
    return conv_post_op(x, params['conv_post']['w'], t_valid, gen)


# ----------------------------------------------------------------------------
# Deterministic synthetic parameter initialization
# ----------------------------------------------------------------------------
def _normal(key, shape, std=0.1):
    return std * jax.random.normal(key, shape, dtype=jnp.float32)


def init_generator_params(key, initial_channel, resblock_kernel_sizes,
                          resblock_dilation_sizes, upsample_rates,
                          upsample_initial_channel, upsample_kernel_sizes):
    keys = iter(jax.random.split(key, 128))
    p = {}
    # conv_pre: Conv1d(initial_channel, upsample_initial_channel, 7, padding=3)
    p['conv_pre'] = {
        'w': _normal(next(keys), (7, initial_channel, upsample_initial_channel)),
        'b': _normal(next(keys), (1, upsample_initial_channel)),
    }
    # weight_norm at init is the identity re-parameterization -> plain weights.
    p['ups'] = []
    for i, (u, k) in enumerate(zip(upsample_rates, upsample_kernel_sizes)):
        cin = upsample_initial_channel // (2 ** i)
        cout = upsample_initial_channel // (2 ** (i + 1))
        p['ups'].append({
            'w': _normal(next(keys), (cin, cout, k), std=0.01),   # init_weights
            'b': _normal(next(keys), (1, cout), std=0.01),
            'stride': u,
            'padding': (k - u) // 2,
        })
    p['resblocks'] = []
    for i in range(len(upsample_rates)):
        ch = upsample_initial_channel // (2 ** (i + 1))
        for k, ds in zip(resblock_kernel_sizes, resblock_dilation_sizes):
            convs1, convs2 = [], []
            for d in ds:
                convs1.append({'w': _normal(next(keys), (k, ch, ch)),
                               'b': _normal(next(keys), (1, ch)),
                               'dilation': d, 'pad': (k * d - d) // 2})
                convs2.append({'w': _normal(next(keys), (k, ch, ch)),
                               'b': _normal(next(keys), (1, ch)),
                               'dilation': 1, 'pad': (k - 1) // 2})
            p['resblocks'].append({'convs1': convs1, 'convs2': convs2})
    ch = upsample_initial_channel // (2 ** len(upsample_rates))
    # conv_post: Conv1d(ch, 1, 7, padding=3, bias=False)
    p['conv_post'] = {'w': _normal(next(keys), (7, ch, 1))}
    return p


if __name__ == "__main__":
    # Small config consistent with the module:
    B, C_in, T = 2, 4, 8
    resblock_kernel_sizes = [3, 5]
    resblock_dilation_sizes = [[1, 3], [1, 3]]
    upsample_rates = [2, 2]
    upsample_kernel_sizes = [4, 4]
    upsample_initial_channel = 32

    key = jax.random.PRNGKey(0)
    kp, kx = jax.random.split(key)
    params = init_generator_params(
        kp, C_in, resblock_kernel_sizes, resblock_dilation_sizes,
        upsample_rates, upsample_initial_channel, upsample_kernel_sizes)

    x_ncw = jax.random.normal(kx, (B, C_in, T), dtype=jnp.float32)  # torch NCW
    x = jnp.transpose(x_ncw, (0, 2, 1))          # layout: (B, T, C)

    y = generator_forward(x, params)             # (B, 1, T_out), NCW like torch
    jax.block_until_ready(y)

    expected_T = T * 2 * 2                       # product of upsample_rates
    assert y.shape == (B, 1, expected_T), y.shape
    assert bool(jnp.all(jnp.isfinite(y)))
    assert float(jnp.max(jnp.abs(y))) <= 1.0 + 1e-5
    print("KERNEL_OK")
</pallas_src>

<mosaic_0001>
module attributes {stable_mosaic.version = 11 : i64} {
  func.func @kernel(%arg0: i32, %arg1: i32, %arg2: memref<1x8x4xbf16, #tpu.memory_space<vmem>>, %arg3: memref<1x8x4xbf16, #tpu.memory_space<vmem>>, %arg4: memref<1x8x4xbf16, #tpu.memory_space<vmem>>, %arg5: memref<7x4x32xbf16, #tpu.memory_space<vmem>>, %arg6: memref<1x32xf32, #tpu.memory_space<vmem>>, %arg7: memref<1x8x32xbf16, #tpu.memory_space<vmem>>) attributes {dimension_semantics = [#tpu.dimension_semantics<parallel>, #tpu.dimension_semantics<parallel>], iteration_bounds = array<i64: 2, 1>, scalar_prefetch = 0 : i64, scratch_operands = 0 : i64, tpu.core_type = #tpu.core_type<tc>, window_params = [{transform_indices = @transform_0, window_bounds = array<i64: 1, 8, 4>}, {transform_indices = @transform_1, window_bounds = array<i64: 1, 8, 4>}, {transform_indices = @transform_2, window_bounds = array<i64: 1, 8, 4>}, {pipeline_mode = #tpu.pipeline_mode<synchronous>, transform_indices = @transform_3, window_bounds = array<i64: 7, 4, 32>}, {pipeline_mode = #tpu.pipeline_mode<synchronous>, transform_indices = @transform_4, window_bounds = array<i64: 1, 32>}, {transform_indices = @transform_5, window_bounds = array<i64: 1, 8, 32>}]} {
    %c0 = arith.constant 0 : index
    %c0_0 = arith.constant 0 : index
    %c0_1 = arith.constant 0 : index
    %0 = vector.load %arg3[%c0, %c0_0, %c0_1] : memref<1x8x4xbf16, #tpu.memory_space<vmem>>, vector<1x8x4xbf16>
    %1 = vector.shape_cast %0 : vector<1x8x4xbf16> to vector<8x4xbf16>
    %c0_2 = arith.constant 0 : index
    %c0_3 = arith.constant 0 : index
    %c0_4 = arith.constant 0 : index
    %2 = vector.load %arg2[%c0_2, %c0_3, %c0_4] : memref<1x8x4xbf16, #tpu.memory_space<vmem>>, vector<1x8x4xbf16>
    %3 = vector.shape_cast %2 : vector<1x8x4xbf16> to vector<8x4xbf16>
    %c0_5 = arith.constant 0 : index
    %c0_6 = arith.constant 0 : index
    %c0_7 = arith.constant 0 : index
    %4 = vector.load %arg4[%c0_5, %c0_6, %c0_7] : memref<1x8x4xbf16, #tpu.memory_space<vmem>>, vector<1x8x4xbf16>
    %5 = vector.shape_cast %4 : vector<1x8x4xbf16> to vector<8x4xbf16>
    %6 = tpu.concatenate %1, %3, %5 in 0 : vector<8x4xbf16>, vector<8x4xbf16>, vector<8x4xbf16> -> vector<24x4xbf16>
    %7 = arith.extf %6 : vector<24x4xbf16> to vector<24x4xf32>
    %8 = tpu.iota {dimensions = array<i32: 0>} : vector<24x1xi32>
    %c8_i32 = arith.constant 8 : i32
    %9 = arith.muli %arg1, %c8_i32 : i32
    %c8_i32_8 = arith.constant 8 : i32
    %10 = arith.subi %9, %c8_i32_8 : i32
    %11 = vector.broadcast %10 : i32 to vector<24x1xi32>
    %12 = arith.addi %11, %8 : vector<24x1xi32>
    %c0_i32 = arith.constant 0 : i32
    %13 = vector.broadcast %c0_i32 : i32 to vector<24x1xi32>
    %14 = arith.cmpi sge, %12, %13 : vector<24x1xi32>
    %c8_i32_9 = arith.constant 8 : i32
    %15 = vector.broadcast %c8_i32_9 : i32 to vector<24x1xi32>
    %16 = arith.cmpi slt, %12, %15 : vector<24x1xi32>
    %17 = arith.andi %14, %16 : vector<24x1xi1>
    %cst = arith.constant 0.000000e+00 : f32
    %18 = vector.shape_cast %17 : vector<24x1xi1> to vector<24x1xi1>
    %19 = vector.broadcast %18 : vector<24x1xi1> to vector<24x4xi1>
    %20 = vector.broadcast %cst : f32 to vector<24x4xf32>
    %21 = arith.select %19, %7, %20 : vector<24x4xi1>, vector<24x4xf32>
    %22 = vector.extract_strided_slice %21 {offsets = [5, 0], sizes = [8, 4], strides = [1, 1]} : vector<24x4xf32> to vector<8x4xf32>
    %23 = arith.truncf %22 : vector<8x4xf32> to vector<8x4xbf16>
    %c0_10 = arith.constant 0 : index
    %c0_11 = arith.constant 0 : index
    %c0_12 = arith.constant 0 : index
    %24 = vector.load %arg5[%c0_10, %c0_11, %c0_12] : memref<7x4x32xbf16, #tpu.memory_space<vmem>>, vector<1x4x32xbf16>
    %25 = vector.shape_cast %24 : vector<1x4x32xbf16> to vector<4x32xbf16>
    %cst_13 = arith.constant dense<0.000000e+00> : vector<8x32xf32>
    %26 = tpu.matmul %23, %25, %cst_13 {dimension_numbers = #tpu.dot_dimension_numbers<[1], [0], [0], [1], [0, 0, 1, 1], [], []>} : vector<8x4xbf16>, vector<4x32xbf16>, vector<8x32xf32> -> vector<8x32xf32>
    %27 = vector.extract_strided_slice %21 {offsets = [6, 0], sizes = [8, 4], strides = [1, 1]} : vector<24x4xf32> to vector<8x4xf32>
    %28 = arith.truncf %27 : vector<8x4xf32> to vector<8x4xbf16>
    %c1 = arith.constant 1 : index
    %c0_14 = arith.constant 0 : index
    %c0_15 = arith.constant 0 : index
    %29 = vector.load %arg5[%c1, %c0_14, %c0_15] : memref<7x4x32xbf16, #tpu.memory_space<vmem>>, vector<1x4x32xbf16>
    %30 = vector.shape_cast %29 : vector<1x4x32xbf16> to vector<4x32xbf16>
    %cst_16 = arith.constant dense<0.000000e+00> : vector<8x32xf32>
    %31 = tpu.matmul %28, %30, %cst_16 {dimension_numbers = #tpu.dot_dimension_numbers<[1], [0], [0], [1], [0, 0, 1, 1], [], []>} : vector<8x4xbf16>, vector<4x32xbf16>, vector<8x32xf32> -> vector<8x32xf32>
    %32 = arith.addf %26, %31 : vector<8x32xf32>
    %33 = vector.extract_strided_slice %21 {offsets = [7, 0], sizes = [8, 4], strides = [1, 1]} : vector<24x4xf32> to vector<8x4xf32>
    %34 = arith.truncf %33 : vector<8x4xf32> to vector<8x4xbf16>
    %c2 = arith.constant 2 : index
    %c0_17 = arith.constant 0 : index
    %c0_18 = arith.constant 0 : index
    %35 = vector.load %arg5[%c2, %c0_17, %c0_18] : memref<7x4x32xbf16, #tpu.memory_space<vmem>>, vector<1x4x32xbf16>
    %36 = vector.shape_cast %35 : vector<1x4x32xbf16> to vector<4x32xbf16>
    %cst_19 = arith.constant dense<0.000000e+00> : vector<8x32xf32>
    %37 = tpu.matmul %34, %36, %cst_19 {dimension_numbers = #tpu.dot_dimension_numbers<[1], [0], [0], [1], [0, 0, 1, 1], [], []>} : vector<8x4xbf16>, vector<4x32xbf16>, vector<8x32xf32> -> vector<8x32xf32>
    %38 = arith.addf %32, %37 : vector<8x32xf32>
    %39 = vector.extract_strided_slice %21 {offsets = [8, 0], sizes = [8, 4], strides = [1, 1]} : vector<24x4xf32> to vector<8x4xf32>
    %40 = arith.truncf %39 : vector<8x4xf32> to vector<8x4xbf16>
    %c3 = arith.constant 3 : index
    %c0_20 = arith.constant 0 : index
    %c0_21 = arith.constant 0 : index
    %41 = vector.load %arg5[%c3, %c0_20, %c0_21] : memref<7x4x32xbf16, #tpu.memory_space<vmem>>, vector<1x4x32xbf16>
    %42 = vector.shape_cast %41 : vector<1x4x32xbf16> to vector<4x32xbf16>
    %cst_22 = arith.constant dense<0.000000e+00> : vector<8x32xf32>
    %43 = tpu.matmul %40, %42, %cst_22 {dimension_numbers = #tpu.dot_dimension_numbers<[1], [0], [0], [1], [0, 0, 1, 1], [], []>} : vector<8x4xbf16>, vector<4x32xbf16>, vector<8x32xf32> -> vector<8x32xf32>
    %44 = arith.addf %38, %43 : vector<8x32xf32>
    %45 = vector.extract_strided_slice %21 {offsets = [9, 0], sizes = [8, 4], strides = [1, 1]} : vector<24x4xf32> to vector<8x4xf32>
    %46 = arith.truncf %45 : vector<8x4xf32> to vector<8x4xbf16>
    %c4 = arith.constant 4 : index
    %c0_23 = arith.constant 0 : index
    %c0_24 = arith.constant 0 : index
    %47 = vector.load %arg5[%c4, %c0_23, %c0_24] : memref<7x4x32xbf16, #tpu.memory_space<vmem>>, vector<1x4x32xbf16>
    %48 = vector.shape_cast %47 : vector<1x4x32xbf16> to vector<4x32xbf16>
    %cst_25 = arith.constant dense<0.000000e+00> : vector<8x32xf32>
    %49 = tpu.matmul %46, %48, %cst_25 {dimension_numbers = #tpu.dot_dimension_numbers<[1], [0], [0], [1], [0, 0, 1, 1], [], []>} : vector<8x4xbf16>, vector<4x32xbf16>, vector<8x32xf32> -> vector<8x32xf32>
    %50 = arith.addf %44, %49 : vector<8x32xf32>
    %51 = vector.extract_strided_slice %21 {offsets = [10, 0], sizes = [8, 4], strides = [1, 1]} : vector<24x4xf32> to vector<8x4xf32>
    %52 = arith.truncf %51 : vector<8x4xf32> to vector<8x4xbf16>
    %c5 = arith.constant 5 : index
    %c0_26 = arith.constant 0 : index
    %c0_27 = arith.constant 0 : index
    %53 = vector.load %arg5[%c5, %c0_26, %c0_27] : memref<7x4x32xbf16, #tpu.memory_space<vmem>>, vector<1x4x32xbf16>
    %54 = vector.shape_cast %53 : vector<1x4x32xbf16> to vector<4x32xbf16>
    %cst_28 = arith.constant dense<0.000000e+00> : vector<8x32xf32>
    %55 = tpu.matmul %52, %54, %cst_28 {dimension_numbers = #tpu.dot_dimension_numbers<[1], [0], [0], [1], [0, 0, 1, 1], [], []>} : vector<8x4xbf16>, vector<4x32xbf16>, vector<8x32xf32> -> vector<8x32xf32>
    %56 = arith.addf %50, %55 : vector<8x32xf32>
    %57 = vector.extract_strided_slice %21 {offsets = [11, 0], sizes = [8, 4], strides = [1, 1]} : vector<24x4xf32> to vector<8x4xf32>
    %58 = arith.truncf %57 : vector<8x4xf32> to vector<8x4xbf16>
    %c6 = arith.constant 6 : index
    %c0_29 = arith.constant 0 : index
    %c0_30 = arith.constant 0 : index
    %59 = vector.load %arg5[%c6, %c0_29, %c0_30] : memref<7x4x32xbf16, #tpu.memory_space<vmem>>, vector<1x4x32xbf16>
    %60 = vector.shape_cast %59 : vector<1x4x32xbf16> to vector<4x32xbf16>
    %cst_31 = arith.constant dense<0.000000e+00> : vector<8x32xf32>
    %61 = tpu.matmul %58, %60, %cst_31 {dimension_numbers = #tpu.dot_dimension_numbers<[1], [0], [0], [1], [0, 0, 1, 1], [], []>} : vector<8x4xbf16>, vector<4x32xbf16>, vector<8x32xf32> -> vector<8x32xf32>
    %62 = arith.addf %56, %61 : vector<8x32xf32>
    %c0_32 = arith.constant 0 : index
    %c0_33 = arith.constant 0 : index
    %63 = vector.load %arg6[%c0_32, %c0_33] : memref<1x32xf32, #tpu.memory_space<vmem>>, vector<1x32xf32>
    %64 = vector.broadcast %63 : vector<1x32xf32> to vector<8x32xf32>
    %65 = arith.addf %62, %64 : vector<8x32xf32>
    %66 = arith.truncf %65 : vector<8x32xf32> to vector<8x32xbf16>
    %c0_34 = arith.constant 0 : index
    %c0_35 = arith.constant 0 : index
    %c0_36 = arith.constant 0 : index
    %67 = vector.load %arg7[%c0_34, %c0_35, %c0_36] : memref<1x8x32xbf16, #tpu.memory_space<vmem>>, vector<1x8x32xbf16>
    %68 = vector.shape_cast %67 : vector<1x8x32xbf16> to vector<8x32xbf16>
    %69 = vector.shape_cast %66 : vector<8x32xbf16> to vector<1x8x32xbf16>
    tpu.vector_store %arg7[%c0_34, %c0_35, %c0_36], %69 {strides = array<i32>} : memref<1x8x32xbf16, #tpu.memory_space<vmem>>, vector<1x8x32xbf16>,
    return
  }
  func.func @transform_0(%arg0: i32, %arg1: i32) -> (i32, i32, i32) {
    %c0_i32 = arith.constant 0 : i32
    %c0_i32_0 = arith.constant 0 : i32
    return %arg0, %arg1, %c0_i32 : i32, i32, i32
  }
  func.func @transform_1(%arg0: i32, %arg1: i32) -> (i32, i32, i32) {
    %c1_i32 = arith.constant 1 : i32
    %0 = arith.muli %arg1, %c1_i32 : i32
    %c1_i32_0 = arith.constant 1 : i32
    %1 = arith.subi %0, %c1_i32_0 : i32
    %c0_i32 = arith.constant 0 : i32
    %2 = arith.maxsi %1, %c0_i32 : i32
    %c0_i32_1 = arith.constant 0 : i32
    %c0_i32_2 = arith.constant 0 : i32
    return %arg0, %2, %c0_i32_1 : i32, i32, i32
  }
  func.func @transform_2(%arg0: i32, %arg1: i32) -> (i32, i32, i32) {
    %c1_i32 = arith.constant 1 : i32
    %0 = arith.addi %arg1, %c1_i32 : i32
    %c1_i32_0 = arith.constant 1 : i32
    %1 = arith.muli %0, %c1_i32_0 : i32
    %c0_i32 = arith.constant 0 : i32
    %2 = arith.minsi %1, %c0_i32 : i32
    %c0_i32_1 = arith.constant 0 : i32
    %c0_i32_2 = arith.constant 0 : i32
    return %arg0, %2, %c0_i32_1 : i32, i32, i32
  }
  func.func @transform_3(%arg0: i32, %arg1: i32) -> (i32, i32, i32) {
    %c0_i32 = arith.constant 0 : i32
    %c0_i32_0 = arith.constant 0 : i32
    %c0_i32_1 = arith.constant 0 : i32
    %c0_i32_2 = arith.constant 0 : i32
    return %c0_i32, %c0_i32_0, %c0_i32_1 : i32, i32, i32
  }
  func.func @transform_4(%arg0: i32, %arg1: i32) -> (i32, i32) {
    %c0_i32 = arith.constant 0 : i32
    %c0_i32_0 = arith.constant 0 : i32
    %c0_i32_1 = arith.constant 0 : i32
    return %c0_i32, %c0_i32_0 : i32, i32
  }
  func.func @transform_5(%arg0: i32, %arg1: i32) -> (i32, i32, i32) {
    %c0_i32 = arith.constant 0 : i32
    %c0_i32_0 = arith.constant 0 : i32
    return %arg0, %arg1, %c0_i32 : i32, i32, i32
  }
}

</mosaic_0001>

<llo_original>
// kernel: tpu_custom_call.1
$region0: #{tpu_custom_call.1}
  #allocation0 [shape = 'u32[]', space=smem, size = 0x4, offset = 0x4, fixed_abs, tag = 'smem constant byte address 0x4 - core index']
  #allocation1 [shape = 'u32[144,128]{1,0:T(1,128)}', space=vmem, size = 0x12000, scoped, tag = 'internal scratch']
  %s0 = inlined_call_operand.vmem [shape: bf16[2,8,4], index: 0, kind: input, shape index: {}]
  %s1 = inlined_call_operand.vmem [shape: bf16[2,8,4], index: 1, kind: input, shape index: {}]
  %s2 = inlined_call_operand.vmem [shape: bf16[2,8,4], index: 2, kind: input, shape index: {}]
  %s3 = inlined_call_operand.vmem [shape: bf16[7,4,32], index: 3, kind: input, shape index: {}]
  %s4 = inlined_call_operand.vmem [shape: f32[1,32], index: 4, kind: input, shape index: {}]
  %s5 = inlined_call_operand.hbm [shape: bf16[2,8,32], index: 5, kind: output, shape index: {}]
  %s6 = sld [smem:[#allocation0]]
  $region53: #{tpu_custom_call.1} parent=0
    _
  %s8 = ssub.s32 1, %s6
  %s9 = scalar_select 0, %s8, %s6
  $region1: #{tpu_custom_call.1} parent=0
    #allocation2 [shape = 'u8[4096]{0}', space=vmem, size = 0x1000, scoped, tag = 'output window, operand 0']
    #allocation3 [shape = 's32[2]{0}', space=sflag, size = 0x8, scoped, tag = 'scoped memory for tpu_custom_call.1']
    %10 = vsyncpa [#allocation3], 0
    %s11 = scalar_lea.sflag [#allocation3], 1
    %12 = vsyncpa %s11, 0
    loop: start=0, step=1, limit=4
    $region2: #{tpu_custom_call.1} parent=1 // loop_pre_header
      _
    $region3: #{tpu_custom_call.1} parent=1 // loop_header
      %s14 = sphi 0, %s18
      %p15 = scmp.ge.s32.totalorder %s14, 4
      %s21 = sphi 0, %s33
      %s22 = sphi 0, %s29
      %s23 = sphi 0, %s21
      %s24 = sphi 0, %s22
      %s25 = sphi 0, %s23
      %s26 = sphi 0, %s24
      %s38 = sphi 0, %s40
      %s41 = sphi 0, %s38
      %s42 = sphi 0, %s41
      %s58 = sphi 0, %s42
      %s72 = sphi 0, %s74
      %s75 = sphi 0, %s72
      %s76 = sphi 0, %s75
      %s92 = sphi 0, %s76
      %s106 = sphi 0, %s108
      %s109 = sphi 0, %s106
      %s110 = sphi 0, %s109
      %s126 = sphi 0, %s110
      %s130 = sphi 0, %s130
      %s132 = sphi 0, %s130
      %s133 = sphi 0, %s132
      %s147 = sphi 0, %s133
      %s151 = sphi 0, %s151
      %s153 = sphi 0, %s151
      %s154 = sphi 0, %s153
      %s168 = sphi 0, %s154
      %s176 = sphi 0, %s178
      %s179 = sphi 0, %s176
      %s180 = sphi 0, %s179
      %s196 = sphi 0, %s180
    $region4: #{tpu_custom_call.1} parent=1 // loop_header_branch
      %17 = sbr.rel (%p15) target = $region8
    $region5: #{tpu_custom_call.1} parent=1 // loop_body
      %s19 = ssub.s32 %s14, 1
      %s20 = ssub.s32 %s14, 2
      %s27 = sadd.s32 1, %s22
      %p28 = scmp.ge.s32.totalorder %s27, 1
      %s29 = scalar_select %p28, 0, %s27
      %s30 = sadd.s32 1, %s21
      %s31 = scalar_select %p28, %s30, %s21
      %p32 = scmp.ge.s32.totalorder %s31, 2
      %s33 = scalar_select %p32, 0, %s31
      %s34 = ssub.s32 %s21, %s33
      %s35 = ssub.s32 %s22, %s29
      %s36 = sor.u32 %s34, %s35
      %p37 = scmp.eq.s32.totalorder %s36, 0
      %s39 = sadd.s32 %s38, 1
      %s40 = scalar_select %p37, %s38, %s39
      %p43 = pneg %p37
      %p44 = scmp.eq.s32.totalorder %s14, 1
      %p45 = por %p43, %p44
      %p46 = scmp.ne.s32.totalorder %s38, %s41
      %p47 = scmp.eq.s32.totalorder %s14, 0
      %p48 = por %p46, %p47
      %p49 = scmp.ne.s32.totalorder %s38, %s41
      %p50 = scmp.eq.s32.totalorder %s19, 1
      %p51 = por %p49, %p50
      %p52 = scmp.ne.s32.totalorder %s41, %s42
      %p53 = scmp.eq.s32.totalorder %s19, 0
      %p54 = por %p52, %p53
      %p55 = scmp.ne.s32.totalorder %s41, %s42
      %p56 = scmp.eq.s32.totalorder %s20, 1
      %p57 = por %p55, %p56
      %p59 = scmp.ne.s32.totalorder %s42, %s58
      %p60 = scmp.eq.s32.totalorder %s20, 0
      %p61 = por %p59, %p60
      %s62 = ssub.s32 %s22, 1
      %p63 = scmp.gt.s32.totalorder %s62, 0
      %s64 = scalar_select %p63, %s62, 0
      %s65 = ssub.s32 %s29, 1
      %p66 = scmp.gt.s32.totalorder %s65, 0
      %s67 = scalar_select %p66, %s65, 0
      %s68 = ssub.s32 %s21, %s33
      %s69 = ssub.s32 %s64, %s67
      %s70 = sor.u32 %s68, %s69
      %p71 = scmp.eq.s32.totalorder %s70, 0
      %s73 = sadd.s32 %s72, 1
      %s74 = scalar_select %p71, %s72, %s73
      %p77 = pneg %p71
      %p78 = scmp.eq.s32.totalorder %s14, 1
      %p79 = por %p77, %p78
      %p80 = scmp.ne.s32.totalorder %s72, %s75
      %p81 = scmp.eq.s32.totalorder %s14, 0
      %p82 = por %p80, %p81
      %p83 = scmp.ne.s32.totalorder %s72, %s75
      %p84 = scmp.eq.s32.totalorder %s19, 1
      %p85 = por %p83, %p84
      %p86 = scmp.ne.s32.totalorder %s75, %s76
      %p87 = scmp.eq.s32.totalorder %s19, 0
      %p88 = por %p86, %p87
      %p89 = scmp.ne.s32.totalorder %s75, %s76
      %p90 = scmp.eq.s32.totalorder %s20, 1
      %p91 = por %p89, %p90
      %p93 = scmp.ne.s32.totalorder %s76, %s92
      %p94 = scmp.eq.s32.totalorder %s20, 0
      %p95 = por %p93, %p94
      %s96 = sadd.s32 %s22, 1
      %p97 = scmp.lt.s32.totalorder %s96, 0
      %s98 = scalar_select %p97, %s96, 0
      %s99 = sadd.s32 %s29, 1
      %p100 = scmp.lt.s32.totalorder %s99, 0
      %s101 = scalar_select %p100, %s99, 0
      %s102 = ssub.s32 %s21, %s33
      %s103 = ssub.s32 %s98, %s101
      %s104 = sor.u32 %s102, %s103
      %p105 = scmp.eq.s32.totalorder %s104, 0
      %s107 = sadd.s32 %s106, 1
      %s108 = scalar_select %p105, %s106, %s107
      %p111 = pneg %p105
      %p112 = scmp.eq.s32.totalorder %s14, 1
      %p113 = por %p111, %p112
      %p114 = scmp.ne.s32.totalorder %s106, %s109
      %p115 = scmp.eq.s32.totalorder %s14, 0
      %p116 = por %p114, %p115
      %p117 = scmp.ne.s32.totalorder %s106, %s109
      %p118 = scmp.eq.s32.totalorder %s19, 1
      %p119 = por %p117, %p118
      %p120 = scmp.ne.s32.totalorder %s109, %s110
      %p121 = scmp.eq.s32.totalorder %s19, 0
      %p122 = por %p120, %p121
      %p123 = scmp.ne.s32.totalorder %s109, %s110
      %p124 = scmp.eq.s32.totalorder %s20, 1
      %p125 = por %p123, %p124
      %p127 = scmp.ne.s32.totalorder %s110, %s126
      %p128 = scmp.eq.s32.totalorder %s20, 0
      %p129 = por %p127, %p128
      %s131 = sadd.s32 %s130, 1
      %p134 = scmp.eq.s32.totalorder %s14, 1
      %p135 = scmp.ne.s32.totalorder %s130, %s132
      %p136 = scmp.eq.s32.totalorder %s14, 0
      %p137 = por %p135, %p136
      %p138 = scmp.ne.s32.totalorder %s130, %s132
      %p139 = scmp.eq.s32.totalorder %s19, 1
      %p140 = por %p138, %p139
      %p141 = scmp.ne.s32.totalorder %s132, %s133
      %p142 = scmp.eq.s32.totalorder %s19, 0
      %p143 = por %p141, %p142
      %p144 = scmp.ne.s32.totalorder %s132, %s133
      %p145 = scmp.eq.s32.totalorder %s20, 1
      %p146 = por %p144, %p145
      %p148 = scmp.ne.s32.totalorder %s133, %s147
      %p149 = scmp.eq.s32.totalorder %s20, 0
      %p150 = por %p148, %p149
      %s152 = sadd.s32 %s151, 1
      %p155 = scmp.eq.s32.totalorder %s14, 1
      %p156 = scmp.ne.s32.totalorder %s151, %s153
      %p157 = scmp.eq.s32.totalorder %s14, 0
      %p158 = por %p156, %p157
      %p159 = scmp.ne.s32.totalorder %s151, %s153
      %p160 = scmp.eq.s32.totalorder %s19, 1
      %p161 = por %p159, %p160
      %p162 = scmp.ne.s32.totalorder %s153, %s154
      %p163 = scmp.eq.s32.totalorder %s19, 0
      %p164 = por %p162, %p163
      %p165 = scmp.ne.s32.totalorder %s153, %s154
      %p166 = scmp.eq.s32.totalorder %s20, 1
      %p167 = por %p165, %p166
      %p169 = scmp.ne.s32.totalorder %s154, %s168
      %p170 = scmp.eq.s32.totalorder %s20, 0
      %p171 = por %p169, %p170
      %s172 = ssub.s32 %s21, %s33
      %s173 = ssub.s32 %s22, %s29
      %s174 = sor.u32 %s172, %s173
      %p175 = scmp.eq.s32.totalorder %s174, 0
      %s177 = sadd.s32 %s176, 1
      %s178 = scalar_select %p175, %s176, %s177
      %p181 = pneg %p175
      %p182 = scmp.eq.s32.totalorder %s14, 1
      %p183 = por %p181, %p182
      %p184 = scmp.ne.s32.totalorder %s176, %s179
      %p185 = scmp.eq.s32.totalorder %s14, 0
      %p186 = por %p184, %p185
      %p187 = scmp.ne.s32.totalorder %s176, %s179
      %p188 = scmp.eq.s32.totalorder %s19, 1
      %p189 = por %p187, %p188
      %p190 = scmp.ne.s32.totalorder %s179, %s180
      %p191 = scmp.eq.s32.totalorder %s19, 0
      %p192 = por %p190, %p191
      %p193 = scmp.ne.s32.totalorder %s179, %s180
      %p194 = scmp.eq.s32.totalorder %s20, 1
      %p195 = por %p193, %p194
      %p197 = scmp.ne.s32.totalorder %s180, %s196
      %p198 = scmp.eq.s32.totalorder %s20, 0
      %p199 = por %p197, %p198
      %p200 = scmp.le.s32.totalorder 1, %s14
      %p201 = scmp.lt.s32.totalorder %s14, 3
      %p202 = pnand %p200, %p201
      %p203 = pneg %p202
      // Predicated region
      $region9: #{tpu_custom_call.1} parent=5 // pred_check
        _
      $region10: #{tpu_custom_call.1} parent=5 // pred_check_branch
        %205 = sbr.rel (%p202) target = $region12
      $region11: #{tpu_custom_call.1} parent=5 // pred_region
        %s206 = ssub.s32 %s14, 1
        // Predicated region
        $region13: #{tpu_custom_call.1} parent=11 // pred_check
          %p207 = pneg %p143
        $region14: #{tpu_custom_call.1} parent=11 // pred_check_branch
          %209 = sbr.rel (%p207) target = $region16
        $region15: #{tpu_custom_call.1} parent=11 // pred_region
          _
        $region16: #{tpu_custom_call.1} parent=11 // pred_fallthru
          _
        // Predicated region
        $region17: #{tpu_custom_call.1} parent=11 // pred_check
          %p210 = pneg %p164
        $region18: #{tpu_custom_call.1} parent=11 // pred_check_branch
          %212 = sbr.rel (%p210) target = $region20
        $region19: #{tpu_custom_call.1} parent=11 // pred_region
          _
        $region20: #{tpu_custom_call.1} parent=11 // pred_fallthru
          _
      $region12: #{tpu_custom_call.1} parent=5 // pred_fallthru
        _
      %p213 = scmp.lt.s32.totalorder %s14, 2
      // Predicated region
      $region21: #{tpu_custom_call.1} parent=5 // pred_check
        %p214 = pneg %p213
      $region22: #{tpu_custom_call.1} parent=5 // pred_check_branch
        %216 = sbr.rel (%p214) target = $region24
      $region23: #{tpu_custom_call.1} parent=5 // pred_region
        // Predicated region
        $region25: #{tpu_custom_call.1} parent=23 // pred_check
          %p217 = pneg %p48
        $region26: #{tpu_custom_call.1} parent=23 // pred_check_branch
          %219 = sbr.rel (%p217) target = $region28
        $region27: #{tpu_custom_call.1} parent=23 // pred_region
          %p220 = scmp.lt.s32.totalorder %s21, 1
          %s221 = scalar_select %p220, %s21, 1
          %p222 = scmp.lt.s32.totalorder %s22, 0
          %s223 = scalar_select %p222, %s22, 0
          %s224 = sadd.s32 %s223, %s221
          %s225 = smul.addr %s224, 4
          %s226 = scalar_lea.vmem %s0, %s225
        $region28: #{tpu_custom_call.1} parent=23 // pred_fallthru
          _
        // Predicated region
        $region29: #{tpu_custom_call.1} parent=23 // pred_check
          %p227 = pneg %p82
        $region30: #{tpu_custom_call.1} parent=23 // pred_check_branch
          %229 = sbr.rel (%p227) target = $region32
        $region31: #{tpu_custom_call.1} parent=23 // pred_region
          %s230 = ssub.s32 %s22, 1
          %p231 = scmp.gt.s32.totalorder %s230, 0
          %s232 = scalar_select %p231, %s230, 0
          %p233 = scmp.lt.s32.totalorder %s21, 1
          %s234 = scalar_select %p233, %s21, 1
          %p235 = scmp.lt.s32.totalorder %s232, 0
          %s236 = scalar_select %p235, %s232, 0
          %s237 = sadd.s32 %s236, %s234
          %s238 = smul.addr %s237, 4
          %s239 = scalar_lea.vmem %s1, %s238
          %s240 = ssub.s32 %s22, 1
          %p241 = scmp.gt.s32.totalorder %s240, 0
          %s242 = scalar_select %p241, %s240, 0
        $region32: #{tpu_custom_call.1} parent=23 // pred_fallthru
          _
        // Predicated region
        $region33: #{tpu_custom_call.1} parent=23 // pred_check
          %p243 = pneg %p116
        $region34: #{tpu_custom_call.1} parent=23 // pred_check_branch
          %245 = sbr.rel (%p243) target = $region36
        $region35: #{tpu_custom_call.1} parent=23 // pred_region
          %s246 = sadd.s32 %s22, 1
          %p247 = scmp.lt.s32.totalorder %s246, 0
          %s248 = scalar_select %p247, %s246, 0
          %p249 = scmp.lt.s32.totalorder %s21, 1
          %s250 = scalar_select %p249, %s21, 1
          %p251 = scmp.lt.s32.totalorder %s248, 0
          %s252 = scalar_select %p251, %s248, 0
          %s253 = sadd.s32 %s252, %s250
          %s254 = smul.addr %s253, 4
          %s255 = scalar_lea.vmem %s2, %s254
          %s256 = sadd.s32 %s22, 1
          %p257 = scmp.lt.s32.totalorder %s256, 0
          %s258 = scalar_select %p257, %s256, 0
        $region36: #{tpu_custom_call.1} parent=23 // pred_fallthru
          _
      $region24: #{tpu_custom_call.1} parent=5 // pred_fallthru
        _
      %p259 = scmp.le.s32.totalorder 1, %s14
      %p260 = scmp.lt.s32.totalorder %s14, 3
      %p261 = pnand %p259, %p260
      %p262 = pneg %p261
      // Predicated region
      $region37: #{tpu_custom_call.1} parent=5 // pred_check
        _
      $region38: #{tpu_custom_call.1} parent=5 // pred_check_branch
        %264 = sbr.rel (%p261) target = $region40
      $region39: #{tpu_custom_call.1} parent=5 // pred_region
        %s265 = ssub.s32 %s14, 1
        %p266 = scmp.lt.s32.totalorder %s23, 1
        %s267 = scalar_select %p266, %s23, 1
        %p268 = scmp.lt.s32.totalorder %s24, 0
        %s269 = scalar_select %p268, %s24, 0
        %s270 = sadd.s32 %s269, %s267
        %s271 = smul.addr %s270, 4
        %s272 = scalar_lea.vmem %s0, %s271
        %p273 = pneg %p54
        %p274 = pneg %p51
        %s275 = ssub.s32 %s24, 1
        %p276 = scmp.gt.s32.totalorder %s275, 0
        %s277 = scalar_select %p276, %s275, 0
        %p278 = scmp.lt.s32.totalorder %s23, 1
        %s279 = scalar_select %p278, %s23, 1
        %p280 = scmp.lt.s32.totalorder %s277, 0
        %s281 = scalar_select %p280, %s277, 0
        %s282 = sadd.s32 %s281, %s279
        %s283 = smul.addr %s282, 4
        %s284 = scalar_lea.vmem %s1, %s283
        %p285 = pneg %p88
        %p286 = pneg %p85
        %s287 = sadd.s32 %s24, 1
        %p288 = scmp.lt.s32.totalorder %s287, 0
        %s289 = scalar_select %p288, %s287, 0
        %p290 = scmp.lt.s32.totalorder %s23, 1
        %s291 = scalar_select %p290, %s23, 1
        %p292 = scmp.lt.s32.totalorder %s289, 0
        %s293 = scalar_select %p292, %s289, 0
        %s294 = sadd.s32 %s293, %s291
        %s295 = smul.addr %s294, 4
        %s296 = scalar_lea.vmem %s2, %s295
        %p297 = pneg %p122
        %p298 = pneg %p119
        %p299 = pneg %p143
        %p300 = pneg %p140
        %p301 = pneg %p164
        %p302 = pneg %p161
        %p303 = pneg %p192
        %p304 = pneg %p189
        %s305 = sand.u32 %s179, 1
        %s306 = scalar_lea.sflag [#allocation3], %s305
        %s307 = sand.u32 %s179, 1
        %s308 = smul.addr %s307, 4
        %s309 = scalar_lea.vmem [#allocation2], %s308
        %p310 = scmp.lt.s32.totalorder %s23, 1
        %s311 = scalar_select %p310, %s23, 1
        %p312 = scmp.lt.s32.totalorder %s24, 0
        %s313 = scalar_select %p312, %s24, 0
        %s314 = sadd.s32 %s313, %s311
        %s315 = smul.addr %s314, 4
        %s316 = scalar_lea.vmem %s0, %s315
        %s317 = ssub.s32 %s24, 1
        %p318 = scmp.gt.s32.totalorder %s317, 0
        %s319 = scalar_select %p318, %s317, 0
        %p320 = scmp.lt.s32.totalorder %s23, 1
        %s321 = scalar_select %p320, %s23, 1
        %p322 = scmp.lt.s32.totalorder %s319, 0
        %s323 = scalar_select %p322, %s319, 0
        %s324 = sadd.s32 %s323, %s321
        %s325 = smul.addr %s324, 4
        %s326 = scalar_lea.vmem %s1, %s325
        %s327 = ssub.s32 %s24, 1
        %p328 = scmp.gt.s32.totalorder %s327, 0
        %s329 = scalar_select %p328, %s327, 0
        %s330 = sadd.s32 %s24, 1
        %p331 = scmp.lt.s32.totalorder %s330, 0
        %s332 = scalar_select %p331, %s330, 0
        %p333 = scmp.lt.s32.totalorder %s23, 1
        %s334 = scalar_select %p333, %s23, 1
        %p335 = scmp.lt.s32.totalorder %s332, 0
        %s336 = scalar_select %p335, %s332, 0
        %s337 = sadd.s32 %s336, %s334
        %s338 = smul.addr %s337, 4
        %s339 = scalar_lea.vmem %s2, %s338
        %s340 = sadd.s32 %s24, 1
        %p341 = scmp.lt.s32.totalorder %s340, 0
        %s342 = scalar_select %p341, %s340, 0
        %v344 = vld [vmem:[%s326] sm:$0xf]
        %v345 = vld [vmem:[%s316] sm:$0xf]
        %v346 = vld [vmem:[%s339] sm:$0xf]
        %v348 = vunpack.c.l.b16 %v345
        %v349 = vpack.c.b16 %v348, %v348
        %vm350 = vcmask 1043456
        %v353 = vsel %vm350, %v344, %v349
        %v355 = vunpack.c.l.bf16 %v353
        %v356 = vunpack.c.h.bf16 %v353
        %v357 = vunpack.c.l.bf16 %v346
        %v358 = vlaneseq
        %v359 = vshrl.u32 %v358, 7
        %v360 = vadd.s32 %v359, 8
        %v361 = vadd.s32 %v359, 16
        %s362 = smul.u32 %s24, 8
        %s363 = ssub.s32 %s362, 8
        %v364 = vstv %s363
        %v365 = vadd.s32 %v364, %v359
        %v366 = vadd.s32 %v364, %v360
        %v367 = vadd.s32 %v364, %v361
        %vm368 = vcmp.ge.s32.totalorder %v365, 0
        %vm369 = vcmp.ge.s32.totalorder %v366, 0
        %vm370 = vcmp.ge.s32.totalorder %v367, 0
        %vm371 = vcmp.lt.s32.totalorder %v365, 8
        %vm372 = vcmp.lt.s32.totalorder %v366, 8
        %vm373 = vcmp.lt.s32.totalorder %v367, 8
        %vm374 = vmand %vm368, %vm371
        %vm375 = vmand %vm369, %vm372
        %vm376 = vmand %vm370, %vm373
        %v377 = vsel %vm374, 1, 0
        %v378 = vsel %vm375, 1, 0
        %v379 = vsel %vm376, 1, 0
        %vm380 = vcmp.eq.s32.totalorder %v377, 1
        %vm381 = vcmp.eq.s32.totalorder %v378, 1
        %vm382 = vcmp.eq.s32.totalorder %v379, 1
        %v383 = vsel %vm380, %v355, 0.0
        %v384 = vsel %vm381, %v356, 0.0
        %v385 = vsel %vm382, %v357, 0.0
        %v386 = vpack.c.bf16 %v384, %v383
        %v387 = vld [vmem:[%s3] sm:$0x3]
        %s388 = scalar_lea.vmem %s3, 2
        %v389 = vld [vmem:[%s388] sm:$0x3]
        %v391 = vrot.slane %v386, 3
        %vm392 = vcmask 31744
        %v394 = vsel %vm392, %v391, 0
        %vm396 = vcmask 1041408
        %v398 = vsel %vm396, %v389, 0
        %400 = vmatprep.subr.bf16.mxu0 0
        %401 = vmatpush1.bf16.msra.mxu0 %v398
        %402 = vmatprep.subr.bf16.mxu0 0
        %403 = vmatpush1.bf16.msra.mxu0 0
        %404 = vmatprep.subr.bf16.mxu0 0
        %405 = vmatpush1.bf16.msra.mxu0 0
        %406 = vmatprep.subr.bf16.mxu0 0
        %407 = vmatpush1.bf16.msra.mxu0 0
        %408 = vmatprep.subr.bf16.mxu0 0
        %409 = vmatpush1.bf16.msra.mxu0 0
        %410 = vmatprep.subr.bf16.mxu0 0
        %411 = vmatpush1.bf16.msra.mxu0 0
        %412 = vmatprep.subr.bf16.mxu0 0
        %413 = vmatpush1.bf16.msra.mxu0 0
        %414 = vmatprep.subr.bf16.mxu0 0
        %415 = vmatpush1.bf16.msra.mxu0 0
        %416 = vmatprep.subr.bf16.mxu0 0
        %417 = vmatpush1.bf16.msra.mxu0 0
        %418 = vmatprep.subr.bf16.mxu0 0
        %419 = vmatpush1.bf16.msra.mxu0 0
        %420 = vmatprep.subr.bf16.mxu0 0
        %421 = vmatpush1.bf16.msra.mxu0 0
        %422 = vmatprep.subr.bf16.mxu0 0
        %423 = vmatpush1.bf16.msra.mxu0 0
        %424 = vmatprep.subr.bf16.mxu0 0
        %425 = vmatpush1.bf16.msra.mxu0 0
        %426 = vmatprep.subr.bf16.mxu0 0
        %427 = vmatpush1.bf16.msra.mxu0 0
        %428 = vmatprep.subr.bf16.mxu0 0
        %429 = vmatpush1.bf16.msra.mxu0 0
        %430 = vmatprep.subr.bf16.mxu0 0
        %431 = vmatpush1.bf16.msra.mxu0 0
        %432 = vmatprep.mubr.bf16.mxu0 0
        %433 = vmatmul.mubr.bf16.gmra.mrb[0].mxu0 %v394
        %v434 = vpop.f32.mrb[0].mxu0
        %v435 = vadd.f32 0.0, %v434
        %v436 = vpop.f32.mrb[0].mxu0
        %v437 = vpop.f32.mrb[0].mxu0
        %v438 = vpop.f32.mrb[0].mxu0
        %439 = vdwg.mxu0
        %v441 = vshrl.u32 %v386, 16
        %v443 = vrot.slane %v441, 2
        %v444 = vshll.u32 %v386, 16
        %v446 = vrot.slane %v444, 3
        %v447 = vor.u32 %v443, %v446
        %v449 = vsel %vm392, %v447, 0
        %v452 = vsel %vm396, %v387, 0
        %454 = vmatprep.subr.bf16.mxu0 0
        %455 = vmatpush1.bf16.msra.mxu0 %v452
        %456 = vmatprep.subr.bf16.mxu0 0
        %457 = vmatpush1.bf16.msra.mxu0 0
        %458 = vmatprep.subr.bf16.mxu0 0
        %459 = vmatpush1.bf16.msra.mxu0 0
        %460 = vmatprep.subr.bf16.mxu0 0
        %461 = vmatpush1.bf16.msra.mxu0 0
        %462 = vmatprep.subr.bf16.mxu0 0
        %463 = vmatpush1.bf16.msra.mxu0 0
        %464 = vmatprep.subr.bf16.mxu0 0
        %465 = vmatpush1.bf16.msra.mxu0 0
        %466 = vmatprep.subr.bf16.mxu0 0
        %467 = vmatpush1.bf16.msra.mxu0 0
        %468 = vmatprep.subr.bf16.mxu0 0
        %469 = vmatpush1.bf16.msra.mxu0 0
        %470 = vmatprep.subr.bf16.mxu0 0
        %471 = vmatpush1.bf16.msra.mxu0 0
        %472 = vmatprep.subr.bf16.mxu0 0
        %473 = vmatpush1.bf16.msra.mxu0 0
        %474 = vmatprep.subr.bf16.mxu0 0
        %475 = vmatpush1.bf16.msra.mxu0 0
        %476 = vmatprep.subr.bf16.mxu0 0
        %477 = vmatpush1.bf16.msra.mxu0 0
        %478 = vmatprep.subr.bf16.mxu0 0
        %479 = vmatpush1.bf16.msra.mxu0 0
        %480 = vmatprep.subr.bf16.mxu0 0
        %481 = vmatpush1.bf16.msra.mxu0 0
        %482 = vmatprep.subr.bf16.mxu0 0
        %483 = vmatpush1.bf16.msra.mxu0 0
        %484 = vmatprep.subr.bf16.mxu0 0
        %485 = vmatpush1.bf16.msra.mxu0 0
        %486 = vmatprep.mubr.bf16.mxu0 0
        %487 = vmatmul.mubr.bf16.gmra.mrb[0].mxu0 %v449
        %v488 = vpop.f32.mrb[0].mxu0
        %v489 = vadd.f32 %v435, %v488
        %v490 = vpop.f32.mrb[0].mxu0
        %v491 = vpop.f32.mrb[0].mxu0
        %v492 = vpop.f32.mrb[0].mxu0
        %493 = vdwg.mxu0
        %s494 = scalar_lea.vmem %s3, 4
        %v495 = vld [vmem:[%s494] sm:$0x3]
        %v496 = vrot.slane %v441, 3
        %v497 = vrot.slane %v444, 4
        %v498 = vor.u32 %v496, %v497
        %v500 = vsel %vm392, %v498, 0
        %v503 = vsel %vm396, %v495, 0
        %505 = vmatprep.subr.bf16.mxu0 0
        %506 = vmatpush1.bf16.msra.mxu0 %v503
        %507 = vmatprep.subr.bf16.mxu0 0
        %508 = vmatpush1.bf16.msra.mxu0 0
        %509 = vmatprep.subr.bf16.mxu0 0
        %510 = vmatpush1.bf16.msra.mxu0 0
        %511 = vmatprep.subr.bf16.mxu0 0
        %512 = vmatpush1.bf16.msra.mxu0 0
        %513 = vmatprep.subr.bf16.mxu0 0
        %514 = vmatpush1.bf16.msra.mxu0 0
        %515 = vmatprep.subr.bf16.mxu0 0
        %516 = vmatpush1.bf16.msra.mxu0 0
        %517 = vmatprep.subr.bf16.mxu0 0
        %518 = vmatpush1.bf16.msra.mxu0 0
        %519 = vmatprep.subr.bf16.mxu0 0
        %520 = vmatpush1.bf16.msra.mxu0 0
        %521 = vmatprep.subr.bf16.mxu0 0
        %522 = vmatpush1.bf16.msra.mxu0 0
        %523 = vmatprep.subr.bf16.mxu0 0
        %524 = vmatpush1.bf16.msra.mxu0 0
        %525 = vmatprep.subr.bf16.mxu0 0
        %526 = vmatpush1.bf16.msra.mxu0 0
        %527 = vmatprep.subr.bf16.mxu0 0
        %528 = vmatpush1.bf16.msra.mxu0 0
        %529 = vmatprep.subr.bf16.mxu0 0
        %530 = vmatpush1.bf16.msra.mxu0 0
        %531 = vmatprep.subr.bf16.mxu0 0
        %532 = vmatpush1.bf16.msra.mxu0 0
        %533 = vmatprep.subr.bf16.mxu0 0
        %534 = vmatpush1.bf16.msra.mxu0 0
        %535 = vmatprep.subr.bf16.mxu0 0
        %536 = vmatpush1.bf16.msra.mxu0 0
        %537 = vmatprep.mubr.bf16.mxu0 0
        %538 = vmatmul.mubr.bf16.gmra.mrb[0].mxu0 %v500
        %v539 = vpop.f32.mrb[0].mxu0
        %v540 = vadd.f32 0.0, %v539
        %v541 = vpop.f32.mrb[0].mxu0
        %v542 = vpop.f32.mrb[0].mxu0
        %v543 = vpop.f32.mrb[0].mxu0
        %544 = vdwg.mxu0
        %v545 = vadd.f32 %v489, %v540
        %v546 = vpack.c.bf16 %v384, %v384
        %s547 = scalar_lea.vmem %s3, 6
        %v548 = vld [vmem:[%s547] sm:$0x3]
        %v550 = vsel %vm392, %v546, 0
        %v553 = vsel %vm396, %v548, 0
        %555 = vmatprep.subr.bf16.mxu0 0
        %556 = vmatpush1.bf16.msra.mxu0 %v553
        %557 = vmatprep.subr.bf16.mxu0 0
        %558 = vmatpush1.bf16.msra.mxu0 0
        %559 = vmatprep.subr.bf16.mxu0 0
        %560 = vmatpush1.bf16.msra.mxu0 0
        %561 = vmatprep.subr.bf16.mxu0 0
        %562 = vmatpush1.bf16.msra.mxu0 0
        %563 = vmatprep.subr.bf16.mxu0 0
        %564 = vmatpush1.bf16.msra.mxu0 0
        %565 = vmatprep.subr.bf16.mxu0 0
        %566 = vmatpush1.bf16.msra.mxu0 0
        %567 = vmatprep.subr.bf16.mxu0 0
        %568 = vmatpush1.bf16.msra.mxu0 0
        %569 = vmatprep.subr.bf16.mxu0 0
        %570 = vmatpush1.bf16.msra.mxu0 0
        %571 = vmatprep.subr.bf16.mxu0 0
        %572 = vmatpush1.bf16.msra.mxu0 0
        %573 = vmatprep.subr.bf16.mxu0 0
        %574 = vmatpush1.bf16.msra.mxu0 0
        %575 = vmatprep.subr.bf16.mxu0 0
        %576 = vmatpush1.bf16.msra.mxu0 0
        %577 = vmatprep.subr.bf16.mxu0 0
        %578 = vmatpush1.bf16.msra.mxu0 0
        %579 = vmatprep.subr.bf16.mxu0 0
        %580 = vmatpush1.bf16.msra.mxu0 0
        %581 = vmatprep.subr.bf16.mxu0 0
        %582 = vmatpush1.bf16.msra.mxu0 0
        %583 = vmatprep.subr.bf16.mxu0 0
        %584 = vmatpush1.bf16.msra.mxu0 0
        %585 = vmatprep.subr.bf16.mxu0 0
        %586 = vmatpush1.bf16.msra.mxu0 0
        %587 = vmatprep.mubr.bf16.mxu0 0
        %588 = vmatmul.mubr.bf16.gmra.mrb[0].mxu0 %v550
        %v589 = vpop.f32.mrb[0].mxu0
        %v590 = vadd.f32 0.0, %v589
        %v591 = vpop.f32.mrb[0].mxu0
        %v592 = vpop.f32.mrb[0].mxu0
        %v593 = vpop.f32.mrb[0].mxu0
        %594 = vdwg.mxu0
        %v595 = vadd.f32 %v545, %v590
        %v596 = vpack.c.bf16 %v385, %v384
        %s597 = scalar_lea.vmem %s3, 8
        %v598 = vld [vmem:[%s597] sm:$0x3]
        %v600 = vshrl.u32 %v596, 16
        %v602 = vshll.u32 %v596, 16
        %v604 = vrot.slane %v602, 1
        %v605 = vor.u32 %v600, %v604
        %v607 = vsel %vm392, %v605, 0
        %v610 = vsel %vm396, %v598, 0
        %612 = vmatprep.subr.bf16.mxu0 0
        %613 = vmatpush1.bf16.msra.mxu0 %v610
        %614 = vmatprep.subr.bf16.mxu0 0
        %615 = vmatpush1.bf16.msra.mxu0 0
        %616 = vmatprep.subr.bf16.mxu0 0
        %617 = vmatpush1.bf16.msra.mxu0 0
        %618 = vmatprep.subr.bf16.mxu0 0
        %619 = vmatpush1.bf16.msra.mxu0 0
        %620 = vmatprep.subr.bf16.mxu0 0
        %621 = vmatpush1.bf16.msra.mxu0 0
        %622 = vmatprep.subr.bf16.mxu0 0
        %623 = vmatpush1.bf16.msra.mxu0 0
        %624 = vmatprep.subr.bf16.mxu0 0
        %625 = vmatpush1.bf16.msra.mxu0 0
        %626 = vmatprep.subr.bf16.mxu0 0
        %627 = vmatpush1.bf16.msra.mxu0 0
        %628 = vmatprep.subr.bf16.mxu0 0
        %629 = vmatpush1.bf16.msra.mxu0 0
        %630 = vmatprep.subr.bf16.mxu0 0
        %631 = vmatpush1.bf16.msra.mxu0 0
        %632 = vmatprep.subr.bf16.mxu0 0
        %633 = vmatpush1.bf16.msra.mxu0 0
        %634 = vmatprep.subr.bf16.mxu0 0
        %635 = vmatpush1.bf16.msra.mxu0 0
        %636 = vmatprep.subr.bf16.mxu0 0
        %637 = vmatpush1.bf16.msra.mxu0 0
        %638 = vmatprep.subr.bf16.mxu0 0
        %639 = vmatpush1.bf16.msra.mxu0 0
        %640 = vmatprep.subr.bf16.mxu0 0
        %641 = vmatpush1.bf16.msra.mxu0 0
        %642 = vmatprep.subr.bf16.mxu0 0
        %643 = vmatpush1.bf16.msra.mxu0 0
        %644 = vmatprep.mubr.bf16.mxu0 0
        %645 = vmatmul.mubr.bf16.gmra.mrb[0].mxu0 %v607
        %v646 = vpop.f32.mrb[0].mxu0
        %v647 = vadd.f32 0.0, %v646
        %v648 = vpop.f32.mrb[0].mxu0
        %v649 = vpop.f32.mrb[0].mxu0
        %v650 = vpop.f32.mrb[0].mxu0
        %651 = vdwg.mxu0
        %v652 = vadd.f32 %v595, %v647
        %s653 = scalar_lea.vmem %s3, 10
        %v654 = vld [vmem:[%s653] sm:$0x3]
        %v656 = vrot.slane %v596, 1
        %v658 = vsel %vm392, %v656, 0
        %v661 = vsel %vm396, %v654, 0
        %663 = vmatprep.subr.bf16.mxu0 0
        %664 = vmatpush1.bf16.msra.mxu0 %v661
        %665 = vmatprep.subr.bf16.mxu0 0
        %666 = vmatpush1.bf16.msra.mxu0 0
        %667 = vmatprep.subr.bf16.mxu0 0
        %668 = vmatpush1.bf16.msra.mxu0 0
        %669 = vmatprep.subr.bf16.mxu0 0
        %670 = vmatpush1.bf16.msra.mxu0 0
        %671 = vmatprep.subr.bf16.mxu0 0
        %672 = vmatpush1.bf16.msra.mxu0 0
        %673 = vmatprep.subr.bf16.mxu0 0
        %674 = vmatpush1.bf16.msra.mxu0 0
        %675 = vmatprep.subr.bf16.mxu0 0
        %676 = vmatpush1.bf16.msra.mxu0 0
        %677 = vmatprep.subr.bf16.mxu0 0
        %678 = vmatpush1.bf16.msra.mxu0 0
        %679 = vmatprep.subr.bf16.mxu0 0
        %680 = vmatpush1.bf16.msra.mxu0 0
        %681 = vmatprep.subr.bf16.mxu0 0
        %682 = vmatpush1.bf16.msra.mxu0 0
        %683 = vmatprep.subr.bf16.mxu0 0
        %684 = vmatpush1.bf16.msra.mxu0 0
        %685 = vmatprep.subr.bf16.mxu0 0
        %686 = vmatpush1.bf16.msra.mxu0 0
        %687 = vmatprep.subr.bf16.mxu0 0
        %688 = vmatpush1.bf16.msra.mxu0 0
        %689 = vmatprep.subr.bf16.mxu0 0
        %690 = vmatpush1.bf16.msra.mxu0 0
        %691 = vmatprep.subr.bf16.mxu0 0
        %692 = vmatpush1.bf16.msra.mxu0 0
        %693 = vmatprep.subr.bf16.mxu0 0
        %694 = vmatpush1.bf16.msra.mxu0 0
        %695 = vmatprep.mubr.bf16.mxu0 0
        %696 = vmatmul.mubr.bf16.gmra.mrb[0].mxu0 %v658
        %v697 = vpop.f32.mrb[0].mxu0
        %v698 = vadd.f32 0.0, %v697
        %v699 = vpop.f32.mrb[0].mxu0
        %v700 = vpop.f32.mrb[0].mxu0
        %v701 = vpop.f32.mrb[0].mxu0
        %702 = vdwg.mxu0
        %v703 = vadd.f32 %v652, %v698
        %s704 = scalar_lea.vmem %s3, 12
        %v705 = vld [vmem:[%s704] sm:$0x3]
        %v706 = vrot.slane %v600, 1
        %v707 = vrot.slane %v602, 2
        %v708 = vor.u32 %v706, %v707
        %v710 = vsel %vm392, %v708, 0
        %v713 = vsel %vm396, %v705, 0
        %715 = vmatprep.subr.bf16.mxu0 0
        %716 = vmatpush1.bf16.msra.mxu0 %v713
        %717 = vmatprep.subr.bf16.mxu0 0
        %718 = vmatpush1.bf16.msra.mxu0 0
        %719 = vmatprep.subr.bf16.mxu0 0
        %720 = vmatpush1.bf16.msra.mxu0 0
        %721 = vmatprep.subr.bf16.mxu0 0
        %722 = vmatpush1.bf16.msra.mxu0 0
        %723 = vmatprep.subr.bf16.mxu0 0
        %724 = vmatpush1.bf16.msra.mxu0 0
        %725 = vmatprep.subr.bf16.mxu0 0
        %726 = vmatpush1.bf16.msra.mxu0 0
        %727 = vmatprep.subr.bf16.mxu0 0
        %728 = vmatpush1.bf16.msra.mxu0 0
        %729 = vmatprep.subr.bf16.mxu0 0
        %730 = vmatpush1.bf16.msra.mxu0 0
        %731 = vmatprep.subr.bf16.mxu0 0
        %732 = vmatpush1.bf16.msra.mxu0 0
        %733 = vmatprep.subr.bf16.mxu0 0
        %734 = vmatpush1.bf16.msra.mxu0 0
        %735 = vmatprep.subr.bf16.mxu0 0
        %736 = vmatpush1.bf16.msra.mxu0 0
        %737 = vmatprep.subr.bf16.mxu0 0
        %738 = vmatpush1.bf16.msra.mxu0 0
        %739 = vmatprep.subr.bf16.mxu0 0
        %740 = vmatpush1.bf16.msra.mxu0 0
        %741 = vmatprep.subr.bf16.mxu0 0
        %742 = vmatpush1.bf16.msra.mxu0 0
        %743 = vmatprep.subr.bf16.mxu0 0
        %744 = vmatpush1.bf16.msra.mxu0 0
        %745 = vmatprep.subr.bf16.mxu0 0
        %746 = vmatpush1.bf16.msra.mxu0 0
        %747 = vmatprep.mubr.bf16.mxu0 0
        %748 = vmatmul.mubr.bf16.gmra.mrb[0].mxu0 %v710
        %v749 = vpop.f32.mrb[0].mxu0
        %v750 = vadd.f32 0.0, %v749
        %v751 = vpop.f32.mrb[0].mxu0
        %v752 = vpop.f32.mrb[0].mxu0
        %v753 = vpop.f32.mrb[0].mxu0
        %754 = vdwg.mxu0
        %v755 = vadd.f32 %v703, %v750
        %v756 = vld [vmem:[%s4] sm:$0x1]
        %v758 = vlaneseq
        %v759 = vshrl.u32 %v758, 7
        %v760 = vsub.s32 0, %v759
        %v761 = vrot.slane %v756, %v760
        %v763 = vadd.f32 %v755, %v761
        %v764 = vpack.c.bf16 %v763, %v763
        %vm765 = vcmask 257024
        %766 = vst.msk [vmem:[%s309] sm:$0xf] %vm765, %v764
        %s767 = sand.u32 %s179, 1
        %s768 = scalar_lea.sflag [#allocation3], %s767
        %s769 = sand.u32 %s179, 1
        %s770 = smul.addr %s769, 4
        %s771 = scalar_lea.vmem [#allocation2], %s770
        // Predicated region
        $region41: #{tpu_custom_call.1} parent=39 // pred_check
          %p772 = pneg %p189
        $region42: #{tpu_custom_call.1} parent=39 // pred_check_branch
          %774 = sbr.rel (%p772) target = $region44
        $region43: #{tpu_custom_call.1} parent=39 // pred_region
          %s776 = ssub.s32 64, 64
          %777 = vsyncadd %s768, %s776
          %s778 = sadd.s32 %s24, %s23
          %s779 = smul.addr %s778, 64
          %s780 = scalar_lea.hbm %s5, %s779
          %s782 = sshll.u32 %s771, 4
          %s783 = int_to_ptr.vmem [resolvable:$true] %s782
          %785 = dma.vmem_to_hbm [thread:$0]  %s783, 64, %s780, %s768
        $region44: #{tpu_custom_call.1} parent=39 // pred_fallthru
          _
      $region40: #{tpu_custom_call.1} parent=5 // pred_fallthru
        _
      %p786 = scmp.le.s32.totalorder 2, %s14
      // Predicated region
      $region45: #{tpu_custom_call.1} parent=5 // pred_check
        %p787 = pneg %p786
      $region46: #{tpu_custom_call.1} parent=5 // pred_check_branch
        %789 = sbr.rel (%p787) target = $region48
      $region47: #{tpu_custom_call.1} parent=5 // pred_region
        %s790 = ssub.s32 %s14, 2
        // Predicated region
        $region49: #{tpu_custom_call.1} parent=47 // pred_check
          %p791 = pneg %p195
        $region50: #{tpu_custom_call.1} parent=47 // pred_check_branch
          %793 = sbr.rel (%p791) target = $region52
        $region51: #{tpu_custom_call.1} parent=47 // pred_region
          %s794 = sand.u32 %s180, 1
          %s795 = scalar_lea.sflag [#allocation3], %s794
          %s796 = sand.u32 %s180, 1
          %s797 = smul.addr %s796, 4
          %s798 = scalar_lea.vmem [#allocation2], %s797
          %799 = dma.done %s795, 64
        $region52: #{tpu_custom_call.1} parent=47 // pred_fallthru
          _
      $region48: #{tpu_custom_call.1} parent=5 // pred_fallthru
        _
    $region6: #{tpu_custom_call.1} parent=1 // loop_footer
      %s18 = sadd.s32 1, %s14
    $region7: #{tpu_custom_call.1} parent=1 // loop_footer_branch
      %13 = sbr.rel target = $region3
    $region8: #{tpu_custom_call.1} parent=1 // loop_exit
      _
    %800 = vsyncpa [#allocation3], 1
    %s801 = scalar_lea.sflag [#allocation3], 1
    %802 = vsyncpa %s801, 1

</llo_original>
